<compile_context>
chip_gen: v7x
topology: tpu7x:2x2x1
jax: 0.10.0
libtpu: 0.0.40
codegen_flags: <defaults>
</compile_context>

<pallas_src>
import functools

import jax
import jax.numpy as jnp
from jax.experimental import pallas as pl
from jax.experimental.pallas import tpu as pltpu

LANES = 128  # padded feature width (lane-dense)


# ----------------------------- Pallas kernel -------------------------------

def _gcn_fused_kernel(a_ref, x_ref, w_ref, b_ref, o_ref, h_ref, *, num_layers):
    """Fused 5-layer GCN: relu?(A_hat @ (H @ W_i) + b_i) chained in VMEM.

    a_ref: (Np, Np)        bf16   normalized adjacency (resident all layers)
    x_ref: (Np, 128)       bf16   padded input features
    w_ref: (L, 128, 128)   bf16   zero-padded stacked weights
    b_ref: (L, 1, 128)     f32    zero-padded stacked biases
    o_ref: (Np, 128)       f32    padded output (lane-dense store)
    h_ref: (Np, 128)       bf16   VMEM activation scratch
    """
    a = a_ref[...]
    h_ref[...] = x_ref[...]
    for i in range(num_layers):          # static unroll: 5 chained GEMM pairs
        # X W  (MXU, bf16 operands, f32 accumulate)
        xw = jnp.dot(h_ref[...], w_ref[i], preferred_element_type=jnp.float32)
        # A_hat (X W)  (MXU) + bias (VPU)
        y = jnp.dot(a, xw.astype(a_ref.dtype),
                    preferred_element_type=jnp.float32)
        y = y + b_ref[i]
        if i < num_layers - 1:
            y = jnp.maximum(y, 0.0)                      # ReLU
            h_ref[...] = y.astype(h_ref.dtype)           # keep activation in VMEM
        else:
            o_ref[...] = y.astype(o_ref.dtype)           # final layer: no ReLU


# ----------------------------- wrapper --------------------------------------

def _round_up(v, m):
    return ((v + m - 1) // m) * m


def gcn_forward(x, a_hat, params):
    """Full fused forward: returns (N, 40) float32."""
    n, f_in = x.shape
    num_layers = len(params)
    out_dim = params[-1][0].shape[1]
    n_pad = max(8, _round_up(n, 8))

    # Lane-dense, bf16 kernel inputs (zero-padded).
    x_p = jnp.zeros((n_pad, LANES), jnp.bfloat16)
    x_p = x_p.at[:n, :f_in].set(x.astype(jnp.bfloat16))
    a_p = jnp.zeros((n_pad, n_pad), jnp.bfloat16)
    a_p = a_p.at[:n, :n].set(a_hat.astype(jnp.bfloat16))

    # Stack + zero-pad weights/biases so every layer is a (128 -> 128) GEMM.
    w_stack = jnp.zeros((num_layers, LANES, LANES), jnp.bfloat16)
    b_stack = jnp.zeros((num_layers, 1, LANES), jnp.float32)
    for i, (w, b) in enumerate(params):
        fi, fo = w.shape
        w_stack = w_stack.at[i, :fi, :fo].set(w.astype(jnp.bfloat16))
        b_stack = b_stack.at[i, 0, :fo].set(b.astype(jnp.float32))

    vmem = pl.BlockSpec(memory_space=pltpu.MemorySpace.VMEM)
    kernel = functools.partial(_gcn_fused_kernel, num_layers=num_layers)
    out = pl.pallas_call(
        kernel,
        out_shape=jax.ShapeDtypeStruct((n_pad, LANES), jnp.float32),
        in_specs=[vmem, vmem, vmem, vmem],
        out_specs=vmem,
        scratch_shapes=[pltpu.VMEM((n_pad, LANES), jnp.bfloat16)],
    )(a_p, x_p, w_stack, b_stack)
    return out[:n, :out_dim]


# ----------------------------- JAX glue -------------------------------------

def normalized_adjacency(edge_index, num_nodes):
    """Dense D^-1/2 (A + I) D^-1/2 matching PyG GCNConv defaults."""
    src, dst = edge_index[0], edge_index[1]
    adj = jnp.zeros((num_nodes, num_nodes), jnp.float32)
    adj = adj.at[dst, src].add(1.0)                       # message src -> dst
    adj = adj + jnp.eye(num_nodes, dtype=jnp.float32)     # add self loops
    deg = adj.sum(axis=1)
    dinv = jnp.where(deg > 0, 1.0 / jnp.sqrt(deg), 0.0)
    return dinv[:, None] * adj * dinv[None, :]


def glorot(key, fan_in, fan_out):
    limit = jnp.sqrt(6.0 / (fan_in + fan_out))
    return jax.random.uniform(key, (fan_in, fan_out), jnp.float32, -limit, limit)


def init_gcn_params(key, hidden_channels):
    dims = [128,
            hidden_channels,
            hidden_channels // 2,
            hidden_channels // 4,
            hidden_channels // 8,
            40]
    params = []
    for i in range(5):
        key, wk = jax.random.split(key)
        w = glorot(wk, dims[i], dims[i + 1])
        b = jnp.zeros((dims[i + 1],), jnp.float32)   # PyG GCNConv bias init = zeros
        params.append((w, b))
    return params


# ----------------------------- reference ------------------------------------

def gcn_forward_ref(x, a_hat, params):
    """Plain-JAX reference with the SAME bf16 rounding points as the kernel."""
    a = a_hat.astype(jnp.bfloat16)
    h = x.astype(jnp.bfloat16)
    for i, (w, b) in enumerate(params):
        xw = jnp.dot(h, w.astype(jnp.bfloat16),
                     preferred_element_type=jnp.float32)
        y = jnp.dot(a, xw.astype(jnp.bfloat16),
                    preferred_element_type=jnp.float32) + b[None, :]
        if i < len(params) - 1:
            y = jnp.maximum(y, 0.0)
            h = y.astype(jnp.bfloat16)
        else:
            h = y
    return h


# ----------------------------- main ------------------------------------------

if __name__ == "__main__":
    num_nodes = 16
    hidden_channels = 32

    key = jax.random.PRNGKey(0)
    kx, kp = jax.random.split(key)

    # node features: (num_nodes, 128)
    x = jax.random.normal(kx, (num_nodes, 128), jnp.float32)

    # deterministic undirected ring graph as edge_index (2, E)
    src = jnp.arange(num_nodes, dtype=jnp.int32)
    dst = (src + 1) % num_nodes
    edge_index = jnp.concatenate(
        [jnp.stack([src, dst], axis=0), jnp.stack([dst, src], axis=0)], axis=1)

    a_hat = normalized_adjacency(edge_index, num_nodes)
    params = init_gcn_params(kp, hidden_channels)

    out = gcn_forward(x, a_hat, params)
    out = jax.block_until_ready(out)

    ref = gcn_forward_ref(x, a_hat, params)
    assert out.shape == (num_nodes, 40), out.shape
    assert jnp.allclose(out, ref, atol=1e-2, rtol=1e-2), "mismatch vs reference"

    print("KERNEL_OK")
</pallas_src>

<mosaic_0001>
module attributes {stable_mosaic.version = 11 : i64} {
  func.func @_gcn_fused_kernel(%arg0: memref<16x16xbf16, #tpu.memory_space<vmem>>, %arg1: memref<16x128xbf16, #tpu.memory_space<vmem>>, %arg2: memref<5x128x128xbf16, #tpu.memory_space<vmem>>, %arg3: memref<5x1x128xf32, #tpu.memory_space<vmem>>, %arg4: memref<16x128xf32, #tpu.memory_space<vmem>>, %arg5: memref<16x128xbf16, #tpu.memory_space<vmem>>) attributes {dimension_semantics = [], scalar_prefetch = 0 : i64, scratch_operands = 1 : i64, tpu.core_type = #tpu.core_type<tc>} {
    %c0 = arith.constant 0 : index
    %c0_0 = arith.constant 0 : index
    %0 = vector.load %arg0[%c0, %c0_0] : memref<16x16xbf16, #tpu.memory_space<vmem>>, vector<16x16xbf16>
    %c0_1 = arith.constant 0 : index
    %c0_2 = arith.constant 0 : index
    %1 = vector.load %arg1[%c0_1, %c0_2] : memref<16x128xbf16, #tpu.memory_space<vmem>>, vector<16x128xbf16>
    %c0_3 = arith.constant 0 : index
    %c0_4 = arith.constant 0 : index
    %2 = vector.load %arg5[%c0_3, %c0_4] : memref<16x128xbf16, #tpu.memory_space<vmem>>, vector<16x128xbf16>
    tpu.vector_store %arg5[%c0_3, %c0_4], %1 {strides = array<i32>} : memref<16x128xbf16, #tpu.memory_space<vmem>>, vector<16x128xbf16>,
    %c0_5 = arith.constant 0 : index
    %c0_6 = arith.constant 0 : index
    %3 = vector.load %arg5[%c0_5, %c0_6] : memref<16x128xbf16, #tpu.memory_space<vmem>>, vector<16x128xbf16>
    %c0_7 = arith.constant 0 : index
    %c0_8 = arith.constant 0 : index
    %c0_9 = arith.constant 0 : index
    %4 = vector.load %arg2[%c0_7, %c0_8, %c0_9] : memref<5x128x128xbf16, #tpu.memory_space<vmem>>, vector<1x128x128xbf16>
    %5 = vector.shape_cast %4 : vector<1x128x128xbf16> to vector<128x128xbf16>
    %cst = arith.constant dense<0.000000e+00> : vector<16x128xf32>
    %6 = tpu.matmul %3, %5, %cst {dimension_numbers = #tpu.dot_dimension_numbers<[1], [0], [0], [1], [0, 0, 1, 1], [], []>} : vector<16x128xbf16>, vector<128x128xbf16>, vector<16x128xf32> -> vector<16x128xf32>
    %7 = arith.truncf %6 : vector<16x128xf32> to vector<16x128xbf16>
    %cst_10 = arith.constant dense<0.000000e+00> : vector<16x128xf32>
    %8 = tpu.matmul %0, %7, %cst_10 {dimension_numbers = #tpu.dot_dimension_numbers<[1], [0], [0], [1], [0, 0, 1, 1], [], []>} : vector<16x16xbf16>, vector<16x128xbf16>, vector<16x128xf32> -> vector<16x128xf32>
    %c0_11 = arith.constant 0 : index
    %c0_12 = arith.constant 0 : index
    %c0_13 = arith.constant 0 : index
    %9 = vector.load %arg3[%c0_11, %c0_12, %c0_13] : memref<5x1x128xf32, #tpu.memory_space<vmem>>, vector<1x1x128xf32>
    %10 = vector.shape_cast %9 : vector<1x1x128xf32> to vector<1x128xf32>
    %11 = vector.broadcast %10 : vector<1x128xf32> to vector<16x128xf32>
    %12 = arith.addf %8, %11 : vector<16x128xf32>
    %cst_14 = arith.constant 0.000000e+00 : f32
    %13 = vector.broadcast %cst_14 : f32 to vector<16x128xf32>
    %14 = arith.maximumf %12, %13 : vector<16x128xf32>
    %15 = arith.truncf %14 : vector<16x128xf32> to vector<16x128xbf16>
    %c0_15 = arith.constant 0 : index
    %c0_16 = arith.constant 0 : index
    %16 = vector.load %arg5[%c0_15, %c0_16] : memref<16x128xbf16, #tpu.memory_space<vmem>>, vector<16x128xbf16>
    tpu.vector_store %arg5[%c0_15, %c0_16], %15 {strides = array<i32>} : memref<16x128xbf16, #tpu.memory_space<vmem>>, vector<16x128xbf16>,
    %c0_17 = arith.constant 0 : index
    %c0_18 = arith.constant 0 : index
    %17 = vector.load %arg5[%c0_17, %c0_18] : memref<16x128xbf16, #tpu.memory_space<vmem>>, vector<16x128xbf16>
    %c1 = arith.constant 1 : index
    %c0_19 = arith.constant 0 : index
    %c0_20 = arith.constant 0 : index
    %18 = vector.load %arg2[%c1, %c0_19, %c0_20] : memref<5x128x128xbf16, #tpu.memory_space<vmem>>, vector<1x128x128xbf16>
    %19 = vector.shape_cast %18 : vector<1x128x128xbf16> to vector<128x128xbf16>
    %cst_21 = arith.constant dense<0.000000e+00> : vector<16x128xf32>
    %20 = tpu.matmul %17, %19, %cst_21 {dimension_numbers = #tpu.dot_dimension_numbers<[1], [0], [0], [1], [0, 0, 1, 1], [], []>} : vector<16x128xbf16>, vector<128x128xbf16>, vector<16x128xf32> -> vector<16x128xf32>
    %21 = arith.truncf %20 : vector<16x128xf32> to vector<16x128xbf16>
    %cst_22 = arith.constant dense<0.000000e+00> : vector<16x128xf32>
    %22 = tpu.matmul %0, %21, %cst_22 {dimension_numbers = #tpu.dot_dimension_numbers<[1], [0], [0], [1], [0, 0, 1, 1], [], []>} : vector<16x16xbf16>, vector<16x128xbf16>, vector<16x128xf32> -> vector<16x128xf32>
    %c1_23 = arith.constant 1 : index
    %c0_24 = arith.constant 0 : index
    %c0_25 = arith.constant 0 : index
    %23 = vector.load %arg3[%c1_23, %c0_24, %c0_25] : memref<5x1x128xf32, #tpu.memory_space<vmem>>, vector<1x1x128xf32>
    %24 = vector.shape_cast %23 : vector<1x1x128xf32> to vector<1x128xf32>
    %25 = vector.broadcast %24 : vector<1x128xf32> to vector<16x128xf32>
    %26 = arith.addf %22, %25 : vector<16x128xf32>
    %cst_26 = arith.constant 0.000000e+00 : f32
    %27 = vector.broadcast %cst_26 : f32 to vector<16x128xf32>
    %28 = arith.maximumf %26, %27 : vector<16x128xf32>
    %29 = arith.truncf %28 : vector<16x128xf32> to vector<16x128xbf16>
    %c0_27 = arith.constant 0 : index
    %c0_28 = arith.constant 0 : index
    %30 = vector.load %arg5[%c0_27, %c0_28] : memref<16x128xbf16, #tpu.memory_space<vmem>>, vector<16x128xbf16>
    tpu.vector_store %arg5[%c0_27, %c0_28], %29 {strides = array<i32>} : memref<16x128xbf16, #tpu.memory_space<vmem>>, vector<16x128xbf16>,
    %c0_29 = arith.constant 0 : index
    %c0_30 = arith.constant 0 : index
    %31 = vector.load %arg5[%c0_29, %c0_30] : memref<16x128xbf16, #tpu.memory_space<vmem>>, vector<16x128xbf16>
    %c2 = arith.constant 2 : index
    %c0_31 = arith.constant 0 : index
    %c0_32 = arith.constant 0 : index
    %32 = vector.load %arg2[%c2, %c0_31, %c0_32] : memref<5x128x128xbf16, #tpu.memory_space<vmem>>, vector<1x128x128xbf16>
    %33 = vector.shape_cast %32 : vector<1x128x128xbf16> to vector<128x128xbf16>
    %cst_33 = arith.constant dense<0.000000e+00> : vector<16x128xf32>
    %34 = tpu.matmul %31, %33, %cst_33 {dimension_numbers = #tpu.dot_dimension_numbers<[1], [0], [0], [1], [0, 0, 1, 1], [], []>} : vector<16x128xbf16>, vector<128x128xbf16>, vector<16x128xf32> -> vector<16x128xf32>
    %35 = arith.truncf %34 : vector<16x128xf32> to vector<16x128xbf16>
    %cst_34 = arith.constant dense<0.000000e+00> : vector<16x128xf32>
    %36 = tpu.matmul %0, %35, %cst_34 {dimension_numbers = #tpu.dot_dimension_numbers<[1], [0], [0], [1], [0, 0, 1, 1], [], []>} : vector<16x16xbf16>, vector<16x128xbf16>, vector<16x128xf32> -> vector<16x128xf32>
    %c2_35 = arith.constant 2 : index
    %c0_36 = arith.constant 0 : index
    %c0_37 = arith.constant 0 : index
    %37 = vector.load %arg3[%c2_35, %c0_36, %c0_37] : memref<5x1x128xf32, #tpu.memory_space<vmem>>, vector<1x1x128xf32>
    %38 = vector.shape_cast %37 : vector<1x1x128xf32> to vector<1x128xf32>
    %39 = vector.broadcast %38 : vector<1x128xf32> to vector<16x128xf32>
    %40 = arith.addf %36, %39 : vector<16x128xf32>
    %cst_38 = arith.constant 0.000000e+00 : f32
    %41 = vector.broadcast %cst_38 : f32 to vector<16x128xf32>
    %42 = arith.maximumf %40, %41 : vector<16x128xf32>
    %43 = arith.truncf %42 : vector<16x128xf32> to vector<16x128xbf16>
    %c0_39 = arith.constant 0 : index
    %c0_40 = arith.constant 0 : index
    %44 = vector.load %arg5[%c0_39, %c0_40] : memref<16x128xbf16, #tpu.memory_space<vmem>>, vector<16x128xbf16>
    tpu.vector_store %arg5[%c0_39, %c0_40], %43 {strides = array<i32>} : memref<16x128xbf16, #tpu.memory_space<vmem>>, vector<16x128xbf16>,
    %c0_41 = arith.constant 0 : index
    %c0_42 = arith.constant 0 : index
    %45 = vector.load %arg5[%c0_41, %c0_42] : memref<16x128xbf16, #tpu.memory_space<vmem>>, vector<16x128xbf16>
    %c3 = arith.constant 3 : index
    %c0_43 = arith.constant 0 : index
    %c0_44 = arith.constant 0 : index
    %46 = vector.load %arg2[%c3, %c0_43, %c0_44] : memref<5x128x128xbf16, #tpu.memory_space<vmem>>, vector<1x128x128xbf16>
    %47 = vector.shape_cast %46 : vector<1x128x128xbf16> to vector<128x128xbf16>
    %cst_45 = arith.constant dense<0.000000e+00> : vector<16x128xf32>
    %48 = tpu.matmul %45, %47, %cst_45 {dimension_numbers = #tpu.dot_dimension_numbers<[1], [0], [0], [1], [0, 0, 1, 1], [], []>} : vector<16x128xbf16>, vector<128x128xbf16>, vector<16x128xf32> -> vector<16x128xf32>
    %49 = arith.truncf %48 : vector<16x128xf32> to vector<16x128xbf16>
    %cst_46 = arith.constant dense<0.000000e+00> : vector<16x128xf32>
    %50 = tpu.matmul %0, %49, %cst_46 {dimension_numbers = #tpu.dot_dimension_numbers<[1], [0], [0], [1], [0, 0, 1, 1], [], []>} : vector<16x16xbf16>, vector<16x128xbf16>, vector<16x128xf32> -> vector<16x128xf32>
    %c3_47 = arith.constant 3 : index
    %c0_48 = arith.constant 0 : index
    %c0_49 = arith.constant 0 : index
    %51 = vector.load %arg3[%c3_47, %c0_48, %c0_49] : memref<5x1x128xf32, #tpu.memory_space<vmem>>, vector<1x1x128xf32>
    %52 = vector.shape_cast %51 : vector<1x1x128xf32> to vector<1x128xf32>
    %53 = vector.broadcast %52 : vector<1x128xf32> to vector<16x128xf32>
    %54 = arith.addf %50, %53 : vector<16x128xf32>
    %cst_50 = arith.constant 0.000000e+00 : f32
    %55 = vector.broadcast %cst_50 : f32 to vector<16x128xf32>
    %56 = arith.maximumf %54, %55 : vector<16x128xf32>
    %57 = arith.truncf %56 : vector<16x128xf32> to vector<16x128xbf16>
    %c0_51 = arith.constant 0 : index
    %c0_52 = arith.constant 0 : index
    %58 = vector.load %arg5[%c0_51, %c0_52] : memref<16x128xbf16, #tpu.memory_space<vmem>>, vector<16x128xbf16>
    tpu.vector_store %arg5[%c0_51, %c0_52], %57 {strides = array<i32>} : memref<16x128xbf16, #tpu.memory_space<vmem>>, vector<16x128xbf16>,
    %c0_53 = arith.constant 0 : index
    %c0_54 = arith.constant 0 : index
    %59 = vector.load %arg5[%c0_53, %c0_54] : memref<16x128xbf16, #tpu.memory_space<vmem>>, vector<16x128xbf16>
    %c4 = arith.constant 4 : index
    %c0_55 = arith.constant 0 : index
    %c0_56 = arith.constant 0 : index
    %60 = vector.load %arg2[%c4, %c0_55, %c0_56] : memref<5x128x128xbf16, #tpu.memory_space<vmem>>, vector<1x128x128xbf16>
    %61 = vector.shape_cast %60 : vector<1x128x128xbf16> to vector<128x128xbf16>
    %cst_57 = arith.constant dense<0.000000e+00> : vector<16x128xf32>
    %62 = tpu.matmul %59, %61, %cst_57 {dimension_numbers = #tpu.dot_dimension_numbers<[1], [0], [0], [1], [0, 0, 1, 1], [], []>} : vector<16x128xbf16>, vector<128x128xbf16>, vector<16x128xf32> -> vector<16x128xf32>
    %63 = arith.truncf %62 : vector<16x128xf32> to vector<16x128xbf16>
    %cst_58 = arith.constant dense<0.000000e+00> : vector<16x128xf32>
    %64 = tpu.matmul %0, %63, %cst_58 {dimension_numbers = #tpu.dot_dimension_numbers<[1], [0], [0], [1], [0, 0, 1, 1], [], []>} : vector<16x16xbf16>, vector<16x128xbf16>, vector<16x128xf32> -> vector<16x128xf32>
    %c4_59 = arith.constant 4 : index
    %c0_60 = arith.constant 0 : index
    %c0_61 = arith.constant 0 : index
    %65 = vector.load %arg3[%c4_59, %c0_60, %c0_61] : memref<5x1x128xf32, #tpu.memory_space<vmem>>, vector<1x1x128xf32>
    %66 = vector.shape_cast %65 : vector<1x1x128xf32> to vector<1x128xf32>
    %67 = vector.broadcast %66 : vector<1x128xf32> to vector<16x128xf32>
    %68 = arith.addf %64, %67 : vector<16x128xf32>
    %c0_62 = arith.constant 0 : index
    %c0_63 = arith.constant 0 : index
    %69 = vector.load %arg4[%c0_62, %c0_63] : memref<16x128xf32, #tpu.memory_space<vmem>>, vector<16x128xf32>
    tpu.vector_store %arg4[%c0_62, %c0_63], %68 {strides = array<i32>} : memref<16x128xf32, #tpu.memory_space<vmem>>, vector<16x128xf32>,
    return
  }
}

</mosaic_0001>

<llo_original>
// kernel: tpu_custom_call.1
$region0: #{tpu_custom_call.1}
  #allocation0 [shape = 'u32[]', space=smem, size = 0x4, offset = 0x4, fixed_abs, tag = 'smem constant byte address 0x4 - core index']
  #allocation1 [shape = 'u32[144,128]{1,0:T(1,128)}', space=vmem, size = 0x12000, scoped, tag = 'internal scratch']
  #allocation2 [shape = 'bf16[16,128]{1,0:T(16,128)(2,1)}', space=vmem, size = 0x1000, scoped, tag = 'scratch operand']
  %s0 = inlined_call_operand.hbm [shape: bf16[16,16], index: 0, kind: input, shape index: {}]
  %s1 = inlined_call_operand.hbm [shape: bf16[16,128], index: 1, kind: input, shape index: {}]
  %s2 = inlined_call_operand.hbm [shape: bf16[5,128,128], index: 2, kind: input, shape index: {}]
  %s3 = inlined_call_operand.vmem [shape: f32[5,1,128], index: 3, kind: input, shape index: {}]
  %s4 = inlined_call_operand.hbm [shape: f32[16,128], index: 4, kind: output, shape index: {}]
  %s5 = sld [smem:[#allocation0]]
  $region38: #{tpu_custom_call.1} parent=0
    _
  %s7 = ssub.s32 1, %s5
  %s8 = scalar_select 0, %s7, %s5
  $region1: #{tpu_custom_call.1} parent=0
    #allocation3 [shape = 'u8[4096]{0}', space=vmem, size = 0x1000, scoped, tag = 'input window, operand 0, single buffered']
    #allocation4 [shape = 's32[1]{0}', space=sflag, size = 0x4, scoped, tag = 'scoped memory for tpu_custom_call.1']
    #allocation5 [shape = 's32[1]{0}', space=sflag, size = 0x4, scoped, tag = 'scoped memory for tpu_custom_call.1']
    #allocation6 [shape = 'u8[4096]{0}', space=vmem, size = 0x1000, scoped, tag = 'input window, operand 1, single buffered']
    #allocation7 [shape = 's32[1]{0}', space=sflag, size = 0x4, scoped, tag = 'scoped memory for tpu_custom_call.1']
    #allocation8 [shape = 'u8[163840]{0}', space=vmem, size = 0x28000, scoped, tag = 'input window, operand 2, single buffered']
    #allocation9 [shape = 'u8[8192]{0}', space=vmem, size = 0x2000, scoped, tag = 'output window, operand 0, single buffered']
    %9 = vsyncpa [#allocation4], 0
    %10 = vsyncpa [#allocation7], 0
    %11 = vsyncpa [#allocation5], 0
    // Predicated region
    $region2: #{tpu_custom_call.1} parent=1 // pred_check
      _
    $region3: #{tpu_custom_call.1} parent=1 // pred_check_branch
      %13 = sbr.rel (0) target = $region5
    $region4: #{tpu_custom_call.1} parent=1 // pred_region
      %s15 = ssub.s32 128, 128
      %16 = vsyncadd [#allocation4], %s15
      %s17 = sshll.u32 [#allocation3], 4
      %s18 = int_to_ptr.vmem [resolvable:$true] %s17
      %23 = dma.hbm_to_vmem [thread:$0]  %s0, 128, %s18, [#allocation4], 64, 64, 4
    $region5: #{tpu_custom_call.1} parent=1 // pred_fallthru
      _
    // Predicated region
    $region6: #{tpu_custom_call.1} parent=1 // pred_check
      _
    $region7: #{tpu_custom_call.1} parent=1 // pred_check_branch
      %25 = sbr.rel (0) target = $region9
    $region8: #{tpu_custom_call.1} parent=1 // pred_region
      %s27 = ssub.s32 128, 128
      %28 = vsyncadd [#allocation7], %s27
      %s29 = sshll.u32 [#allocation6], 4
      %s30 = int_to_ptr.vmem [resolvable:$true] %s29
      %35 = dma.hbm_to_vmem [thread:$0]  %s1, 128, %s30, [#allocation7], 64, 64, 4
    $region9: #{tpu_custom_call.1} parent=1 // pred_fallthru
      _
    // Predicated region
    $region10: #{tpu_custom_call.1} parent=1 // pred_check
      _
    $region11: #{tpu_custom_call.1} parent=1 // pred_check_branch
      %37 = sbr.rel (0) target = $region13
    $region12: #{tpu_custom_call.1} parent=1 // pred_region
      %s39 = ssub.s32 5120, 5120
      %40 = vsyncadd [#allocation7], %s39
      %s41 = sshll.u32 [#allocation8], 4
      %s42 = int_to_ptr.vmem [resolvable:$true] %s41
      %47 = dma.hbm_to_vmem [thread:$0]  %s2, 5120, %s42, [#allocation7], 64, 64, 4
    $region13: #{tpu_custom_call.1} parent=1 // pred_fallthru
      _
    // Predicated region
    $region14: #{tpu_custom_call.1} parent=1 // pred_check
      _
    $region15: #{tpu_custom_call.1} parent=1 // pred_check_branch
      %49 = sbr.rel (0) target = $region17
    $region16: #{tpu_custom_call.1} parent=1 // pred_region
      _
    $region17: #{tpu_custom_call.1} parent=1 // pred_fallthru
      _
    // Predicated region
    $region18: #{tpu_custom_call.1} parent=1 // pred_check
      _
    $region19: #{tpu_custom_call.1} parent=1 // pred_check_branch
      %51 = sbr.rel (0) target = $region21
    $region20: #{tpu_custom_call.1} parent=1 // pred_region
      %52 = dma.done [#allocation4], 128
    $region21: #{tpu_custom_call.1} parent=1 // pred_fallthru
      _
    // Predicated region
    $region22: #{tpu_custom_call.1} parent=1 // pred_check
      _
    $region23: #{tpu_custom_call.1} parent=1 // pred_check_branch
      %54 = sbr.rel (0) target = $region25
    $region24: #{tpu_custom_call.1} parent=1 // pred_region
      %55 = dma.done [#allocation7], 128
    $region25: #{tpu_custom_call.1} parent=1 // pred_fallthru
      _
    // Predicated region
    $region26: #{tpu_custom_call.1} parent=1 // pred_check
      _
    $region27: #{tpu_custom_call.1} parent=1 // pred_check_branch
      %57 = sbr.rel (0) target = $region29
    $region28: #{tpu_custom_call.1} parent=1 // pred_region
      %58 = dma.done [#allocation7], 5120
    $region29: #{tpu_custom_call.1} parent=1 // pred_fallthru
      _
    %v60 = vld [vmem:[#allocation3] sm:$0xf]
    %v61 = vld [vmem:[#allocation3 + $0x4] sm:$0xf]
    %v62 = vld [vmem:[#allocation6] sm:$0xf]
    %v63 = vld [vmem:[#allocation6 + $0x4] sm:$0xf]
    %v66 = vunpack.c.l.b16 %v62
    %v67 = vunpack.c.l.b16 %v63
    %v68 = vpack.c.b16 %v67, %v66
    %70 = vst [vmem:[#allocation2] sm:$0xff] %v68
    %v71 = vld [vmem:[#allocation2] sm:$0xff]
    %v72 = vld [vmem:[#allocation8] sm:$0xf]
    %v73 = vld [vmem:[#allocation8 + $0x4] sm:$0xf]
    %v74 = vld [vmem:[#allocation8 + $0x8] sm:$0xf]
    %v75 = vld [vmem:[#allocation8 + $0xc] sm:$0xf]
    %v76 = vld [vmem:[#allocation8 + $0x10] sm:$0xf]
    %v77 = vld [vmem:[#allocation8 + $0x14] sm:$0xf]
    %v78 = vld [vmem:[#allocation8 + $0x18] sm:$0xf]
    %v79 = vld [vmem:[#allocation8 + $0x1c] sm:$0xf]
    %v80 = vld [vmem:[#allocation8 + $0x20] sm:$0xf]
    %v81 = vld [vmem:[#allocation8 + $0x24] sm:$0xf]
    %v82 = vld [vmem:[#allocation8 + $0x28] sm:$0xf]
    %v83 = vld [vmem:[#allocation8 + $0x2c] sm:$0xf]
    %v84 = vld [vmem:[#allocation8 + $0x30] sm:$0xf]
    %v85 = vld [vmem:[#allocation8 + $0x34] sm:$0xf]
    %v86 = vld [vmem:[#allocation8 + $0x38] sm:$0xf]
    %v87 = vld [vmem:[#allocation8 + $0x3c] sm:$0xf]
    %v104 = vunpack.c.l.b16 %v72
    %v105 = vunpack.c.l.b16 %v73
    %v106 = vunpack.c.l.b16 %v74
    %v107 = vunpack.c.l.b16 %v75
    %v108 = vunpack.c.l.b16 %v76
    %v109 = vunpack.c.l.b16 %v77
    %v110 = vunpack.c.l.b16 %v78
    %v111 = vunpack.c.l.b16 %v79
    %v112 = vunpack.c.l.b16 %v80
    %v113 = vunpack.c.l.b16 %v81
    %v114 = vunpack.c.l.b16 %v82
    %v115 = vunpack.c.l.b16 %v83
    %v116 = vunpack.c.l.b16 %v84
    %v117 = vunpack.c.l.b16 %v85
    %v118 = vunpack.c.l.b16 %v86
    %v119 = vunpack.c.l.b16 %v87
    %v120 = vpack.c.b16 %v105, %v104
    %v121 = vpack.c.b16 %v107, %v106
    %v122 = vpack.c.b16 %v109, %v108
    %v123 = vpack.c.b16 %v111, %v110
    %v124 = vpack.c.b16 %v113, %v112
    %v125 = vpack.c.b16 %v115, %v114
    %v126 = vpack.c.b16 %v117, %v116
    %v127 = vpack.c.b16 %v119, %v118
    %136 = vmatprep.subr.bf16.mxu0 0
    %137 = vmatpush1.bf16.msra.mxu0 %v120
    %138 = vmatprep.subr.bf16.mxu0 0
    %139 = vmatpush1.bf16.msra.mxu0 %v121
    %140 = vmatprep.subr.bf16.mxu0 0
    %141 = vmatpush1.bf16.msra.mxu0 %v122
    %142 = vmatprep.subr.bf16.mxu0 0
    %143 = vmatpush1.bf16.msra.mxu0 %v123
    %144 = vmatprep.subr.bf16.mxu0 0
    %145 = vmatpush1.bf16.msra.mxu0 %v124
    %146 = vmatprep.subr.bf16.mxu0 0
    %147 = vmatpush1.bf16.msra.mxu0 %v125
    %148 = vmatprep.subr.bf16.mxu0 0
    %149 = vmatpush1.bf16.msra.mxu0 %v126
    %150 = vmatprep.subr.bf16.mxu0 0
    %151 = vmatpush1.bf16.msra.mxu0 %v127
    %152 = vmatprep.subr.bf16.mxu0 0
    %153 = vmatpush1.bf16.msra.mxu0 0
    %154 = vmatprep.subr.bf16.mxu0 0
    %155 = vmatpush1.bf16.msra.mxu0 0
    %156 = vmatprep.subr.bf16.mxu0 0
    %157 = vmatpush1.bf16.msra.mxu0 0
    %158 = vmatprep.subr.bf16.mxu0 0
    %159 = vmatpush1.bf16.msra.mxu0 0
    %160 = vmatprep.subr.bf16.mxu0 0
    %161 = vmatpush1.bf16.msra.mxu0 0
    %162 = vmatprep.subr.bf16.mxu0 0
    %163 = vmatpush1.bf16.msra.mxu0 0
    %164 = vmatprep.subr.bf16.mxu0 0
    %165 = vmatpush1.bf16.msra.mxu0 0
    %166 = vmatprep.subr.bf16.mxu0 0
    %167 = vmatpush1.bf16.msra.mxu0 0
    %168 = vmatprep.mubr.bf16.mxu0 0
    %169 = vmatmul.mubr.bf16.gmra.mrb[0].mxu0 %v71
    %v170 = vpop.f32.mrb[0].mxu0
    %v171 = vadd.f32 0.0, %v170
    %v172 = vpop.f32.mrb[0].mxu0
    %v173 = vpop.f32.mrb[0].mxu0
    %v174 = vadd.f32 0.0, %v173
    %v175 = vpop.f32.mrb[0].mxu0
    %176 = vdwg.mxu0
    %v177 = vpack.c.bf16 %v174, %v171
    %v178 = vld [vmem:[%s3] sm:$0x1]
    %v180 = vlaneseq
    %v181 = vshrl.u32 %v180, 7
    %v182 = vsub.s32 0, %v181
    %v183 = vrot.slane %v178, %v182
    %v187 = vunpack.c.l.b16 %v60
    %v188 = vunpack.c.l.b16 %v61
    %v189 = vpack.c.b16 %v188, %v187
    %vm190 = vcmask 130048
    %v192 = vsel %vm190, %v189, 0
    %194 = vmatprep.subr.bf16.mxu0 0
    %195 = vmatpush1.bf16.msra.mxu0 %v177
    %196 = vmatprep.subr.bf16.mxu0 0
    %197 = vmatpush1.bf16.msra.mxu0 0
    %198 = vmatprep.subr.bf16.mxu0 0
    %199 = vmatpush1.bf16.msra.mxu0 0
    %200 = vmatprep.subr.bf16.mxu0 0
    %201 = vmatpush1.bf16.msra.mxu0 0
    %202 = vmatprep.subr.bf16.mxu0 0
    %203 = vmatpush1.bf16.msra.mxu0 0
    %204 = vmatprep.subr.bf16.mxu0 0
    %205 = vmatpush1.bf16.msra.mxu0 0
    %206 = vmatprep.subr.bf16.mxu0 0
    %207 = vmatpush1.bf16.msra.mxu0 0
    %208 = vmatprep.subr.bf16.mxu0 0
    %209 = vmatpush1.bf16.msra.mxu0 0
    %210 = vmatprep.subr.bf16.mxu0 0
    %211 = vmatpush1.bf16.msra.mxu0 0
    %212 = vmatprep.subr.bf16.mxu0 0
    %213 = vmatpush1.bf16.msra.mxu0 0
    %214 = vmatprep.subr.bf16.mxu0 0
    %215 = vmatpush1.bf16.msra.mxu0 0
    %216 = vmatprep.subr.bf16.mxu0 0
    %217 = vmatpush1.bf16.msra.mxu0 0
    %218 = vmatprep.subr.bf16.mxu0 0
    %219 = vmatpush1.bf16.msra.mxu0 0
    %220 = vmatprep.subr.bf16.mxu0 0
    %221 = vmatpush1.bf16.msra.mxu0 0
    %222 = vmatprep.subr.bf16.mxu0 0
    %223 = vmatpush1.bf16.msra.mxu0 0
    %224 = vmatprep.subr.bf16.mxu0 0
    %225 = vmatpush1.bf16.msra.mxu0 0
    %226 = vmatprep.mubr.bf16.mxu0 0
    %227 = vmatmul.mubr.bf16.gmra.mrb[0].mxu0 %v192
    %v228 = vpop.f32.mrb[0].mxu0
    %v229 = vadd.f32 %v183, %v228
    %v230 = vpop.f32.mrb[0].mxu0
    %v231 = vpop.f32.mrb[0].mxu0
    %v232 = vadd.f32 %v183, %v231
    %v233 = vpop.f32.mrb[0].mxu0
    %234 = vdwg.mxu0
    %v235 = vmax.f32 %v229, 0.0
    %v236 = vmax.f32 %v232, 0.0
    %v237 = vpack.c.bf16 %v236, %v235
    %238 = vst [vmem:[#allocation2] sm:$0xff] %v237
    %v239 = vld [vmem:[#allocation2] sm:$0xff]
    %s240 = scalar_lea.vmem [#allocation8], 64
    %v241 = vld [vmem:[%s240] sm:$0xf]
    %v242 = vld [vmem:[%s240 + $0x4] sm:$0xf]
    %v243 = vld [vmem:[%s240 + $0x8] sm:$0xf]
    %v244 = vld [vmem:[%s240 + $0xc] sm:$0xf]
    %v245 = vld [vmem:[%s240 + $0x10] sm:$0xf]
    %v246 = vld [vmem:[%s240 + $0x14] sm:$0xf]
    %v247 = vld [vmem:[%s240 + $0x18] sm:$0xf]
    %v248 = vld [vmem:[%s240 + $0x1c] sm:$0xf]
    %v249 = vld [vmem:[%s240 + $0x20] sm:$0xf]
    %v250 = vld [vmem:[%s240 + $0x24] sm:$0xf]
    %v251 = vld [vmem:[%s240 + $0x28] sm:$0xf]
    %v252 = vld [vmem:[%s240 + $0x2c] sm:$0xf]
    %v253 = vld [vmem:[%s240 + $0x30] sm:$0xf]
    %v254 = vld [vmem:[%s240 + $0x34] sm:$0xf]
    %v255 = vld [vmem:[%s240 + $0x38] sm:$0xf]
    %v256 = vld [vmem:[%s240 + $0x3c] sm:$0xf]
    %v273 = vunpack.c.l.b16 %v241
    %v274 = vunpack.c.l.b16 %v242
    %v275 = vunpack.c.l.b16 %v243
    %v276 = vunpack.c.l.b16 %v244
    %v277 = vunpack.c.l.b16 %v245
    %v278 = vunpack.c.l.b16 %v246
    %v279 = vunpack.c.l.b16 %v247
    %v280 = vunpack.c.l.b16 %v248
    %v281 = vunpack.c.l.b16 %v249
    %v282 = vunpack.c.l.b16 %v250
    %v283 = vunpack.c.l.b16 %v251
    %v284 = vunpack.c.l.b16 %v252
    %v285 = vunpack.c.l.b16 %v253
    %v286 = vunpack.c.l.b16 %v254
    %v287 = vunpack.c.l.b16 %v255
    %v288 = vunpack.c.l.b16 %v256
    %v289 = vpack.c.b16 %v274, %v273
    %v290 = vpack.c.b16 %v276, %v275
    %v291 = vpack.c.b16 %v278, %v277
    %v292 = vpack.c.b16 %v280, %v279
    %v293 = vpack.c.b16 %v282, %v281
    %v294 = vpack.c.b16 %v284, %v283
    %v295 = vpack.c.b16 %v286, %v285
    %v296 = vpack.c.b16 %v288, %v287
    %305 = vmatprep.subr.bf16.mxu0 0
    %306 = vmatpush1.bf16.msra.mxu0 %v289
    %307 = vmatprep.subr.bf16.mxu0 0
    %308 = vmatpush1.bf16.msra.mxu0 %v290
    %309 = vmatprep.subr.bf16.mxu0 0
    %310 = vmatpush1.bf16.msra.mxu0 %v291
    %311 = vmatprep.subr.bf16.mxu0 0
    %312 = vmatpush1.bf16.msra.mxu0 %v292
    %313 = vmatprep.subr.bf16.mxu0 0
    %314 = vmatpush1.bf16.msra.mxu0 %v293
    %315 = vmatprep.subr.bf16.mxu0 0
    %316 = vmatpush1.bf16.msra.mxu0 %v294
    %317 = vmatprep.subr.bf16.mxu0 0
    %318 = vmatpush1.bf16.msra.mxu0 %v295
    %319 = vmatprep.subr.bf16.mxu0 0
    %320 = vmatpush1.bf16.msra.mxu0 %v296
    %321 = vmatprep.subr.bf16.mxu0 0
    %322 = vmatpush1.bf16.msra.mxu0 0
    %323 = vmatprep.subr.bf16.mxu0 0
    %324 = vmatpush1.bf16.msra.mxu0 0
    %325 = vmatprep.subr.bf16.mxu0 0
    %326 = vmatpush1.bf16.msra.mxu0 0
    %327 = vmatprep.subr.bf16.mxu0 0
    %328 = vmatpush1.bf16.msra.mxu0 0
    %329 = vmatprep.subr.bf16.mxu0 0
    %330 = vmatpush1.bf16.msra.mxu0 0
    %331 = vmatprep.subr.bf16.mxu0 0
    %332 = vmatpush1.bf16.msra.mxu0 0
    %333 = vmatprep.subr.bf16.mxu0 0
    %334 = vmatpush1.bf16.msra.mxu0 0
    %335 = vmatprep.subr.bf16.mxu0 0
    %336 = vmatpush1.bf16.msra.mxu0 0
    %337 = vmatprep.mubr.bf16.mxu0 0
    %338 = vmatmul.mubr.bf16.gmra.mrb[0].mxu0 %v239
    %v339 = vpop.f32.mrb[0].mxu0
    %v340 = vadd.f32 0.0, %v339
    %v341 = vpop.f32.mrb[0].mxu0
    %v342 = vpop.f32.mrb[0].mxu0
    %v343 = vadd.f32 0.0, %v342
    %v344 = vpop.f32.mrb[0].mxu0
    %345 = vdwg.mxu0
    %v346 = vpack.c.bf16 %v343, %v340
    %s347 = scalar_lea.vmem %s3, 1
    %v348 = vld [vmem:[%s347] sm:$0x1]
    %v350 = vlaneseq
    %v351 = vshrl.u32 %v350, 7
    %v352 = vsub.s32 0, %v351
    %v353 = vrot.slane %v348, %v352
    %355 = vmatprep.subr.bf16.mxu0 0
    %356 = vmatpush1.bf16.msra.mxu0 %v346
    %357 = vmatprep.subr.bf16.mxu0 0
    %358 = vmatpush1.bf16.msra.mxu0 0
    %359 = vmatprep.subr.bf16.mxu0 0
    %360 = vmatpush1.bf16.msra.mxu0 0
    %361 = vmatprep.subr.bf16.mxu0 0
    %362 = vmatpush1.bf16.msra.mxu0 0
    %363 = vmatprep.subr.bf16.mxu0 0
    %364 = vmatpush1.bf16.msra.mxu0 0
    %365 = vmatprep.subr.bf16.mxu0 0
    %366 = vmatpush1.bf16.msra.mxu0 0
    %367 = vmatprep.subr.bf16.mxu0 0
    %368 = vmatpush1.bf16.msra.mxu0 0
    %369 = vmatprep.subr.bf16.mxu0 0
    %370 = vmatpush1.bf16.msra.mxu0 0
    %371 = vmatprep.subr.bf16.mxu0 0
    %372 = vmatpush1.bf16.msra.mxu0 0
    %373 = vmatprep.subr.bf16.mxu0 0
    %374 = vmatpush1.bf16.msra.mxu0 0
    %375 = vmatprep.subr.bf16.mxu0 0
    %376 = vmatpush1.bf16.msra.mxu0 0
    %377 = vmatprep.subr.bf16.mxu0 0
    %378 = vmatpush1.bf16.msra.mxu0 0
    %379 = vmatprep.subr.bf16.mxu0 0
    %380 = vmatpush1.bf16.msra.mxu0 0
    %381 = vmatprep.subr.bf16.mxu0 0
    %382 = vmatpush1.bf16.msra.mxu0 0
    %383 = vmatprep.subr.bf16.mxu0 0
    %384 = vmatpush1.bf16.msra.mxu0 0
    %385 = vmatprep.subr.bf16.mxu0 0
    %386 = vmatpush1.bf16.msra.mxu0 0
    %387 = vmatprep.mubr.bf16.mxu0 0
    %388 = vmatmul.mubr.bf16.gmra.mrb[0].mxu0 %v192
    %v389 = vpop.f32.mrb[0].mxu0
    %v390 = vadd.f32 %v353, %v389
    %v391 = vpop.f32.mrb[0].mxu0
    %v392 = vpop.f32.mrb[0].mxu0
    %v393 = vadd.f32 %v353, %v392
    %v394 = vpop.f32.mrb[0].mxu0
    %395 = vdwg.mxu0
    %v396 = vmax.f32 %v390, 0.0
    %v397 = vmax.f32 %v393, 0.0
    %v398 = vpack.c.bf16 %v397, %v396
    %399 = vst [vmem:[#allocation2] sm:$0xff] %v398
    %v400 = vld [vmem:[#allocation2] sm:$0xff]
    %s401 = scalar_lea.vmem [#allocation8], 128
    %v402 = vld [vmem:[%s401] sm:$0xf]
    %v403 = vld [vmem:[%s401 + $0x4] sm:$0xf]
    %v404 = vld [vmem:[%s401 + $0x8] sm:$0xf]
    %v405 = vld [vmem:[%s401 + $0xc] sm:$0xf]
    %v406 = vld [vmem:[%s401 + $0x10] sm:$0xf]
    %v407 = vld [vmem:[%s401 + $0x14] sm:$0xf]
    %v408 = vld [vmem:[%s401 + $0x18] sm:$0xf]
    %v409 = vld [vmem:[%s401 + $0x1c] sm:$0xf]
    %v410 = vld [vmem:[%s401 + $0x20] sm:$0xf]
    %v411 = vld [vmem:[%s401 + $0x24] sm:$0xf]
    %v412 = vld [vmem:[%s401 + $0x28] sm:$0xf]
    %v413 = vld [vmem:[%s401 + $0x2c] sm:$0xf]
    %v414 = vld [vmem:[%s401 + $0x30] sm:$0xf]
    %v415 = vld [vmem:[%s401 + $0x34] sm:$0xf]
    %v416 = vld [vmem:[%s401 + $0x38] sm:$0xf]
    %v417 = vld [vmem:[%s401 + $0x3c] sm:$0xf]
    %v434 = vunpack.c.l.b16 %v402
    %v435 = vunpack.c.l.b16 %v403
    %v436 = vunpack.c.l.b16 %v404
    %v437 = vunpack.c.l.b16 %v405
    %v438 = vunpack.c.l.b16 %v406
    %v439 = vunpack.c.l.b16 %v407
    %v440 = vunpack.c.l.b16 %v408
    %v441 = vunpack.c.l.b16 %v409
    %v442 = vunpack.c.l.b16 %v410
    %v443 = vunpack.c.l.b16 %v411
    %v444 = vunpack.c.l.b16 %v412
    %v445 = vunpack.c.l.b16 %v413
    %v446 = vunpack.c.l.b16 %v414
    %v447 = vunpack.c.l.b16 %v415
    %v448 = vunpack.c.l.b16 %v416
    %v449 = vunpack.c.l.b16 %v417
    %v450 = vpack.c.b16 %v435, %v434
    %v451 = vpack.c.b16 %v437, %v436
    %v452 = vpack.c.b16 %v439, %v438
    %v453 = vpack.c.b16 %v441, %v440
    %v454 = vpack.c.b16 %v443, %v442
    %v455 = vpack.c.b16 %v445, %v444
    %v456 = vpack.c.b16 %v447, %v446
    %v457 = vpack.c.b16 %v449, %v448
    %466 = vmatprep.subr.bf16.mxu0 0
    %467 = vmatpush1.bf16.msra.mxu0 %v450
    %468 = vmatprep.subr.bf16.mxu0 0
    %469 = vmatpush1.bf16.msra.mxu0 %v451
    %470 = vmatprep.subr.bf16.mxu0 0
    %471 = vmatpush1.bf16.msra.mxu0 %v452
    %472 = vmatprep.subr.bf16.mxu0 0
    %473 = vmatpush1.bf16.msra.mxu0 %v453
    %474 = vmatprep.subr.bf16.mxu0 0
    %475 = vmatpush1.bf16.msra.mxu0 %v454
    %476 = vmatprep.subr.bf16.mxu0 0
    %477 = vmatpush1.bf16.msra.mxu0 %v455
    %478 = vmatprep.subr.bf16.mxu0 0
    %479 = vmatpush1.bf16.msra.mxu0 %v456
    %480 = vmatprep.subr.bf16.mxu0 0
    %481 = vmatpush1.bf16.msra.mxu0 %v457
    %482 = vmatprep.subr.bf16.mxu0 0
    %483 = vmatpush1.bf16.msra.mxu0 0
    %484 = vmatprep.subr.bf16.mxu0 0
    %485 = vmatpush1.bf16.msra.mxu0 0
    %486 = vmatprep.subr.bf16.mxu0 0
    %487 = vmatpush1.bf16.msra.mxu0 0
    %488 = vmatprep.subr.bf16.mxu0 0
    %489 = vmatpush1.bf16.msra.mxu0 0
    %490 = vmatprep.subr.bf16.mxu0 0
    %491 = vmatpush1.bf16.msra.mxu0 0
    %492 = vmatprep.subr.bf16.mxu0 0
    %493 = vmatpush1.bf16.msra.mxu0 0
    %494 = vmatprep.subr.bf16.mxu0 0
    %495 = vmatpush1.bf16.msra.mxu0 0
    %496 = vmatprep.subr.bf16.mxu0 0
    %497 = vmatpush1.bf16.msra.mxu0 0
    %498 = vmatprep.mubr.bf16.mxu0 0
    %499 = vmatmul.mubr.bf16.gmra.mrb[0].mxu0 %v400
    %v500 = vpop.f32.mrb[0].mxu0
    %v501 = vadd.f32 0.0, %v500
    %v502 = vpop.f32.mrb[0].mxu0
    %v503 = vpop.f32.mrb[0].mxu0
    %v504 = vadd.f32 0.0, %v503
    %v505 = vpop.f32.mrb[0].mxu0
    %506 = vdwg.mxu0
    %v507 = vpack.c.bf16 %v504, %v501
    %s508 = scalar_lea.vmem %s3, 2
    %v509 = vld [vmem:[%s508] sm:$0x1]
    %v511 = vlaneseq
    %v512 = vshrl.u32 %v511, 7
    %v513 = vsub.s32 0, %v512
    %v514 = vrot.slane %v509, %v513
    %516 = vmatprep.subr.bf16.mxu0 0
    %517 = vmatpush1.bf16.msra.mxu0 %v507
    %518 = vmatprep.subr.bf16.mxu0 0
    %519 = vmatpush1.bf16.msra.mxu0 0
    %520 = vmatprep.subr.bf16.mxu0 0
    %521 = vmatpush1.bf16.msra.mxu0 0
    %522 = vmatprep.subr.bf16.mxu0 0
    %523 = vmatpush1.bf16.msra.mxu0 0
    %524 = vmatprep.subr.bf16.mxu0 0
    %525 = vmatpush1.bf16.msra.mxu0 0
    %526 = vmatprep.subr.bf16.mxu0 0
    %527 = vmatpush1.bf16.msra.mxu0 0
    %528 = vmatprep.subr.bf16.mxu0 0
    %529 = vmatpush1.bf16.msra.mxu0 0
    %530 = vmatprep.subr.bf16.mxu0 0
    %531 = vmatpush1.bf16.msra.mxu0 0
    %532 = vmatprep.subr.bf16.mxu0 0
    %533 = vmatpush1.bf16.msra.mxu0 0
    %534 = vmatprep.subr.bf16.mxu0 0
    %535 = vmatpush1.bf16.msra.mxu0 0
    %536 = vmatprep.subr.bf16.mxu0 0
    %537 = vmatpush1.bf16.msra.mxu0 0
    %538 = vmatprep.subr.bf16.mxu0 0
    %539 = vmatpush1.bf16.msra.mxu0 0
    %540 = vmatprep.subr.bf16.mxu0 0
    %541 = vmatpush1.bf16.msra.mxu0 0
    %542 = vmatprep.subr.bf16.mxu0 0
    %543 = vmatpush1.bf16.msra.mxu0 0
    %544 = vmatprep.subr.bf16.mxu0 0
    %545 = vmatpush1.bf16.msra.mxu0 0
    %546 = vmatprep.subr.bf16.mxu0 0
    %547 = vmatpush1.bf16.msra.mxu0 0
    %548 = vmatprep.mubr.bf16.mxu0 0
    %549 = vmatmul.mubr.bf16.gmra.mrb[0].mxu0 %v192
    %v550 = vpop.f32.mrb[0].mxu0
    %v551 = vadd.f32 %v514, %v550
    %v552 = vpop.f32.mrb[0].mxu0
    %v553 = vpop.f32.mrb[0].mxu0
    %v554 = vadd.f32 %v514, %v553
    %v555 = vpop.f32.mrb[0].mxu0
    %556 = vdwg.mxu0
    %v557 = vmax.f32 %v551, 0.0
    %v558 = vmax.f32 %v554, 0.0
    %v559 = vpack.c.bf16 %v558, %v557
    %560 = vst [vmem:[#allocation2] sm:$0xff] %v559
    %v561 = vld [vmem:[#allocation2] sm:$0xff]
    %s562 = scalar_lea.vmem [#allocation8], 192
    %v563 = vld [vmem:[%s562] sm:$0xf]
    %v564 = vld [vmem:[%s562 + $0x4] sm:$0xf]
    %v565 = vld [vmem:[%s562 + $0x8] sm:$0xf]
    %v566 = vld [vmem:[%s562 + $0xc] sm:$0xf]
    %v567 = vld [vmem:[%s562 + $0x10] sm:$0xf]
    %v568 = vld [vmem:[%s562 + $0x14] sm:$0xf]
    %v569 = vld [vmem:[%s562 + $0x18] sm:$0xf]
    %v570 = vld [vmem:[%s562 + $0x1c] sm:$0xf]
    %v571 = vld [vmem:[%s562 + $0x20] sm:$0xf]
    %v572 = vld [vmem:[%s562 + $0x24] sm:$0xf]
    %v573 = vld [vmem:[%s562 + $0x28] sm:$0xf]
    %v574 = vld [vmem:[%s562 + $0x2c] sm:$0xf]
    %v575 = vld [vmem:[%s562 + $0x30] sm:$0xf]
    %v576 = vld [vmem:[%s562 + $0x34] sm:$0xf]
    %v577 = vld [vmem:[%s562 + $0x38] sm:$0xf]
    %v578 = vld [vmem:[%s562 + $0x3c] sm:$0xf]
    %v595 = vunpack.c.l.b16 %v563
    %v596 = vunpack.c.l.b16 %v564
    %v597 = vunpack.c.l.b16 %v565
    %v598 = vunpack.c.l.b16 %v566
    %v599 = vunpack.c.l.b16 %v567
    %v600 = vunpack.c.l.b16 %v568
    %v601 = vunpack.c.l.b16 %v569
    %v602 = vunpack.c.l.b16 %v570
    %v603 = vunpack.c.l.b16 %v571
    %v604 = vunpack.c.l.b16 %v572
    %v605 = vunpack.c.l.b16 %v573
    %v606 = vunpack.c.l.b16 %v574
    %v607 = vunpack.c.l.b16 %v575
    %v608 = vunpack.c.l.b16 %v576
    %v609 = vunpack.c.l.b16 %v577
    %v610 = vunpack.c.l.b16 %v578
    %v611 = vpack.c.b16 %v596, %v595
    %v612 = vpack.c.b16 %v598, %v597
    %v613 = vpack.c.b16 %v600, %v599
    %v614 = vpack.c.b16 %v602, %v601
    %v615 = vpack.c.b16 %v604, %v603
    %v616 = vpack.c.b16 %v606, %v605
    %v617 = vpack.c.b16 %v608, %v607
    %v618 = vpack.c.b16 %v610, %v609
    %627 = vmatprep.subr.bf16.mxu0 0
    %628 = vmatpush1.bf16.msra.mxu0 %v611
    %629 = vmatprep.subr.bf16.mxu0 0
    %630 = vmatpush1.bf16.msra.mxu0 %v612
    %631 = vmatprep.subr.bf16.mxu0 0
    %632 = vmatpush1.bf16.msra.mxu0 %v613
    %633 = vmatprep.subr.bf16.mxu0 0
    %634 = vmatpush1.bf16.msra.mxu0 %v614
    %635 = vmatprep.subr.bf16.mxu0 0
    %636 = vmatpush1.bf16.msra.mxu0 %v615
    %637 = vmatprep.subr.bf16.mxu0 0
    %638 = vmatpush1.bf16.msra.mxu0 %v616
    %639 = vmatprep.subr.bf16.mxu0 0
    %640 = vmatpush1.bf16.msra.mxu0 %v617
    %641 = vmatprep.subr.bf16.mxu0 0
    %642 = vmatpush1.bf16.msra.mxu0 %v618
    %643 = vmatprep.subr.bf16.mxu0 0
    %644 = vmatpush1.bf16.msra.mxu0 0
    %645 = vmatprep.subr.bf16.mxu0 0
    %646 = vmatpush1.bf16.msra.mxu0 0
    %647 = vmatprep.subr.bf16.mxu0 0
    %648 = vmatpush1.bf16.msra.mxu0 0
    %649 = vmatprep.subr.bf16.mxu0 0
    %650 = vmatpush1.bf16.msra.mxu0 0
    %651 = vmatprep.subr.bf16.mxu0 0
    %652 = vmatpush1.bf16.msra.mxu0 0
    %653 = vmatprep.subr.bf16.mxu0 0
    %654 = vmatpush1.bf16.msra.mxu0 0
    %655 = vmatprep.subr.bf16.mxu0 0
    %656 = vmatpush1.bf16.msra.mxu0 0
    %657 = vmatprep.subr.bf16.mxu0 0
    %658 = vmatpush1.bf16.msra.mxu0 0
    %659 = vmatprep.mubr.bf16.mxu0 0
    %660 = vmatmul.mubr.bf16.gmra.mrb[0].mxu0 %v561
    %v661 = vpop.f32.mrb[0].mxu0
    %v662 = vadd.f32 0.0, %v661
    %v663 = vpop.f32.mrb[0].mxu0
    %v664 = vpop.f32.mrb[0].mxu0
    %v665 = vadd.f32 0.0, %v664
    %v666 = vpop.f32.mrb[0].mxu0
    %667 = vdwg.mxu0
    %v668 = vpack.c.bf16 %v665, %v662
    %s669 = scalar_lea.vmem %s3, 3
    %v670 = vld [vmem:[%s669] sm:$0x1]
    %v672 = vlaneseq
    %v673 = vshrl.u32 %v672, 7
    %v674 = vsub.s32 0, %v673
    %v675 = vrot.slane %v670, %v674
    %677 = vmatprep.subr.bf16.mxu0 0
    %678 = vmatpush1.bf16.msra.mxu0 %v668
    %679 = vmatprep.subr.bf16.mxu0 0
    %680 = vmatpush1.bf16.msra.mxu0 0
    %681 = vmatprep.subr.bf16.mxu0 0
    %682 = vmatpush1.bf16.msra.mxu0 0
    %683 = vmatprep.subr.bf16.mxu0 0
    %684 = vmatpush1.bf16.msra.mxu0 0
    %685 = vmatprep.subr.bf16.mxu0 0
    %686 = vmatpush1.bf16.msra.mxu0 0
    %687 = vmatprep.subr.bf16.mxu0 0
    %688 = vmatpush1.bf16.msra.mxu0 0
    %689 = vmatprep.subr.bf16.mxu0 0
    %690 = vmatpush1.bf16.msra.mxu0 0
    %691 = vmatprep.subr.bf16.mxu0 0
    %692 = vmatpush1.bf16.msra.mxu0 0
    %693 = vmatprep.subr.bf16.mxu0 0
    %694 = vmatpush1.bf16.msra.mxu0 0
    %695 = vmatprep.subr.bf16.mxu0 0
    %696 = vmatpush1.bf16.msra.mxu0 0
    %697 = vmatprep.subr.bf16.mxu0 0
    %698 = vmatpush1.bf16.msra.mxu0 0
    %699 = vmatprep.subr.bf16.mxu0 0
    %700 = vmatpush1.bf16.msra.mxu0 0
    %701 = vmatprep.subr.bf16.mxu0 0
    %702 = vmatpush1.bf16.msra.mxu0 0
    %703 = vmatprep.subr.bf16.mxu0 0
    %704 = vmatpush1.bf16.msra.mxu0 0
    %705 = vmatprep.subr.bf16.mxu0 0
    %706 = vmatpush1.bf16.msra.mxu0 0
    %707 = vmatprep.subr.bf16.mxu0 0
    %708 = vmatpush1.bf16.msra.mxu0 0
    %709 = vmatprep.mubr.bf16.mxu0 0
    %710 = vmatmul.mubr.bf16.gmra.mrb[0].mxu0 %v192
    %v711 = vpop.f32.mrb[0].mxu0
    %v712 = vadd.f32 %v675, %v711
    %v713 = vpop.f32.mrb[0].mxu0
    %v714 = vpop.f32.mrb[0].mxu0
    %v715 = vadd.f32 %v675, %v714
    %v716 = vpop.f32.mrb[0].mxu0
    %717 = vdwg.mxu0
    %v718 = vmax.f32 %v712, 0.0
    %v719 = vmax.f32 %v715, 0.0
    %v720 = vpack.c.bf16 %v719, %v718
    %721 = vst [vmem:[#allocation2] sm:$0xff] %v720
    %v722 = vld [vmem:[#allocation2] sm:$0xff]
    %s723 = scalar_lea.vmem [#allocation8], 256
    %v724 = vld [vmem:[%s723] sm:$0xf]
    %v725 = vld [vmem:[%s723 + $0x4] sm:$0xf]
    %v726 = vld [vmem:[%s723 + $0x8] sm:$0xf]
    %v727 = vld [vmem:[%s723 + $0xc] sm:$0xf]
    %v728 = vld [vmem:[%s723 + $0x10] sm:$0xf]
    %v729 = vld [vmem:[%s723 + $0x14] sm:$0xf]
    %v730 = vld [vmem:[%s723 + $0x18] sm:$0xf]
    %v731 = vld [vmem:[%s723 + $0x1c] sm:$0xf]
    %v732 = vld [vmem:[%s723 + $0x20] sm:$0xf]
    %v733 = vld [vmem:[%s723 + $0x24] sm:$0xf]
    %v734 = vld [vmem:[%s723 + $0x28] sm:$0xf]
    %v735 = vld [vmem:[%s723 + $0x2c] sm:$0xf]
    %v736 = vld [vmem:[%s723 + $0x30] sm:$0xf]
    %v737 = vld [vmem:[%s723 + $0x34] sm:$0xf]
    %v738 = vld [vmem:[%s723 + $0x38] sm:$0xf]
    %v739 = vld [vmem:[%s723 + $0x3c] sm:$0xf]
    %v756 = vunpack.c.l.b16 %v724
    %v757 = vunpack.c.l.b16 %v725
    %v758 = vunpack.c.l.b16 %v726
    %v759 = vunpack.c.l.b16 %v727
    %v760 = vunpack.c.l.b16 %v728
    %v761 = vunpack.c.l.b16 %v729
    %v762 = vunpack.c.l.b16 %v730
    %v763 = vunpack.c.l.b16 %v731
    %v764 = vunpack.c.l.b16 %v732
    %v765 = vunpack.c.l.b16 %v733
    %v766 = vunpack.c.l.b16 %v734
    %v767 = vunpack.c.l.b16 %v735
    %v768 = vunpack.c.l.b16 %v736
    %v769 = vunpack.c.l.b16 %v737
    %v770 = vunpack.c.l.b16 %v738
    %v771 = vunpack.c.l.b16 %v739
    %v772 = vpack.c.b16 %v757, %v756
    %v773 = vpack.c.b16 %v759, %v758
    %v774 = vpack.c.b16 %v761, %v760
    %v775 = vpack.c.b16 %v763, %v762
    %v776 = vpack.c.b16 %v765, %v764
    %v777 = vpack.c.b16 %v767, %v766
    %v778 = vpack.c.b16 %v769, %v768
    %v779 = vpack.c.b16 %v771, %v770
    %788 = vmatprep.subr.bf16.mxu0 0
    %789 = vmatpush1.bf16.msra.mxu0 %v772
    %790 = vmatprep.subr.bf16.mxu0 0
    %791 = vmatpush1.bf16.msra.mxu0 %v773
    %792 = vmatprep.subr.bf16.mxu0 0
    %793 = vmatpush1.bf16.msra.mxu0 %v774
    %794 = vmatprep.subr.bf16.mxu0 0
    %795 = vmatpush1.bf16.msra.mxu0 %v775
    %796 = vmatprep.subr.bf16.mxu0 0
    %797 = vmatpush1.bf16.msra.mxu0 %v776
    %798 = vmatprep.subr.bf16.mxu0 0
    %799 = vmatpush1.bf16.msra.mxu0 %v777
    %800 = vmatprep.subr.bf16.mxu0 0
    %801 = vmatpush1.bf16.msra.mxu0 %v778
    %802 = vmatprep.subr.bf16.mxu0 0
    %803 = vmatpush1.bf16.msra.mxu0 %v779
    %804 = vmatprep.subr.bf16.mxu0 0
    %805 = vmatpush1.bf16.msra.mxu0 0
    %806 = vmatprep.subr.bf16.mxu0 0
    %807 = vmatpush1.bf16.msra.mxu0 0
    %808 = vmatprep.subr.bf16.mxu0 0
    %809 = vmatpush1.bf16.msra.mxu0 0
    %810 = vmatprep.subr.bf16.mxu0 0
    %811 = vmatpush1.bf16.msra.mxu0 0
    %812 = vmatprep.subr.bf16.mxu0 0
    %813 = vmatpush1.bf16.msra.mxu0 0
    %814 = vmatprep.subr.bf16.mxu0 0
    %815 = vmatpush1.bf16.msra.mxu0 0
    %816 = vmatprep.subr.bf16.mxu0 0
    %817 = vmatpush1.bf16.msra.mxu0 0
    %818 = vmatprep.subr.bf16.mxu0 0
    %819 = vmatpush1.bf16.msra.mxu0 0
    %820 = vmatprep.mubr.bf16.mxu0 0
    %821 = vmatmul.mubr.bf16.gmra.mrb[0].mxu0 %v722
    %v822 = vpop.f32.mrb[0].mxu0
    %v823 = vadd.f32 0.0, %v822
    %v824 = vpop.f32.mrb[0].mxu0
    %v825 = vpop.f32.mrb[0].mxu0
    %v826 = vadd.f32 0.0, %v825
    %v827 = vpop.f32.mrb[0].mxu0
    %828 = vdwg.mxu0
    %v829 = vpack.c.bf16 %v826, %v823
    %s830 = scalar_lea.vmem %s3, 4
    %v831 = vld [vmem:[%s830] sm:$0x1]
    %v833 = vlaneseq
    %v834 = vshrl.u32 %v833, 7
    %v835 = vsub.s32 0, %v834
    %v836 = vrot.slane %v831, %v835
    %838 = vmatprep.subr.bf16.mxu0 0
    %839 = vmatpush1.bf16.msra.mxu0 %v829
    %840 = vmatprep.subr.bf16.mxu0 0
    %841 = vmatpush1.bf16.msra.mxu0 0
    %842 = vmatprep.subr.bf16.mxu0 0
    %843 = vmatpush1.bf16.msra.mxu0 0
    %844 = vmatprep.subr.bf16.mxu0 0
    %845 = vmatpush1.bf16.msra.mxu0 0
    %846 = vmatprep.subr.bf16.mxu0 0
    %847 = vmatpush1.bf16.msra.mxu0 0
    %848 = vmatprep.subr.bf16.mxu0 0
    %849 = vmatpush1.bf16.msra.mxu0 0
    %850 = vmatprep.subr.bf16.mxu0 0
    %851 = vmatpush1.bf16.msra.mxu0 0
    %852 = vmatprep.subr.bf16.mxu0 0
    %853 = vmatpush1.bf16.msra.mxu0 0
    %854 = vmatprep.subr.bf16.mxu0 0
    %855 = vmatpush1.bf16.msra.mxu0 0
    %856 = vmatprep.subr.bf16.mxu0 0
    %857 = vmatpush1.bf16.msra.mxu0 0
    %858 = vmatprep.subr.bf16.mxu0 0
    %859 = vmatpush1.bf16.msra.mxu0 0
    %860 = vmatprep.subr.bf16.mxu0 0
    %861 = vmatpush1.bf16.msra.mxu0 0
    %862 = vmatprep.subr.bf16.mxu0 0
    %863 = vmatpush1.bf16.msra.mxu0 0
    %864 = vmatprep.subr.bf16.mxu0 0
    %865 = vmatpush1.bf16.msra.mxu0 0
    %866 = vmatprep.subr.bf16.mxu0 0
    %867 = vmatpush1.bf16.msra.mxu0 0
    %868 = vmatprep.subr.bf16.mxu0 0
    %869 = vmatpush1.bf16.msra.mxu0 0
    %870 = vmatprep.mubr.bf16.mxu0 0
    %871 = vmatmul.mubr.bf16.gmra.mrb[0].mxu0 %v192
    %v872 = vpop.f32.mrb[0].mxu0
    %v873 = vadd.f32 %v836, %v872
    %v874 = vpop.f32.mrb[0].mxu0
    %v875 = vpop.f32.mrb[0].mxu0
    %v876 = vadd.f32 %v836, %v875
    %v877 = vpop.f32.mrb[0].mxu0
    %878 = vdwg.mxu0
    %879 = vst [vmem:[#allocation9] sm:$0xff] %v873
    %880 = vst [vmem:[#allocation9 + $0x8] sm:$0xff] %v876
    // Predicated region
    $region30: #{tpu_custom_call.1} parent=1 // pred_check
      _
    $region31: #{tpu_custom_call.1} parent=1 // pred_check_branch
      %882 = sbr.rel (0) target = $region33
    $region32: #{tpu_custom_call.1} parent=1 // pred_region
      %s884 = ssub.s32 256, 256
      %885 = vsyncadd [#allocation5], %s884
      %s886 = sshll.u32 [#allocation9], 4
      %s887 = int_to_ptr.vmem [resolvable:$true] %s886
      %892 = dma.vmem_to_hbm [thread:$0]  %s887, 256, %s4, [#allocation5], 128, 128, 8
    $region33: #{tpu_custom_call.1} parent=1 // pred_fallthru
      _
    // Predicated region
    $region34: #{tpu_custom_call.1} parent=1 // pred_check
      _
    $region35: #{tpu_custom_call.1} parent=1 // pred_check_branch
      %894 = sbr.rel (0) target = $region37
    $region36: #{tpu_custom_call.1} parent=1 // pred_region
      %895 = dma.done [#allocation5], 256
    $region37: #{tpu_custom_call.1} parent=1 // pred_fallthru
      _
    %896 = vsyncpa [#allocation4], 1
    %897 = vsyncpa [#allocation7], 1
    %898 = vsyncpa [#allocation5], 1

</llo_original>
